<compile_context>
chip_gen: v5e
topology: v5e:2x2
jax: 0.10.0
libtpu: 0.0.40
codegen_flags: <defaults>
</compile_context>

<pallas_src>
import math

import jax
import jax.numpy as jnp
from jax import lax
from jax.experimental import pallas as pl
from jax.experimental.pallas import tpu as pltpu

LANES = 128          # lane width of a vreg
BR_ALIGN = 32        # block-row granularity (covers f32 (8,128) and bf16 (16,128) tiles)
MIN_GRID_STEPS = 8   # keep >= ~8 grid steps so v7x's 2 TCs each get >= ~4 pipelined steps
TINY_N = 4096        # below this many flat elements, pure JAX beats a kernel launch


def duffing_forward_ref(z_t, *, delta, beta, alpha, tau_1=0.05, tau_2=0.05,
                        bin_sz=0.005):
    """Pure-JAX reference identical to the PyTorch forward."""
    tau_1_eff = bin_sz / tau_1
    tau_2_eff = bin_sz / tau_2
    z0 = z_t[..., 0]
    z1 = z_t[..., 1]
    d0 = z0 + tau_1_eff * z1
    d1 = z1 - tau_2_eff * (delta * z1 + z0 * (beta + alpha * z0 ** 2))
    return jnp.stack([d0, d1], axis=-1)


def _make_duffing_kernel(delta, beta, alpha, tau_1_eff, tau_2_eff):
    """Build the Duffing Euler-step kernel with static params folded in.

    The VMEM tile holds the *interleaved* flat state: lane 2k carries z[...,0]
    of pair k, lane 2k+1 carries z[...,1].  128 is even, so a pair never
    straddles the lane boundary and a single-lane rotation always reaches the
    partner lane.  The partner fetch is made robust to the roll direction
    convention by also rolling a lane-index iota and selecting whichever of the
    two single-lane rotations actually sourced lane (j ^ 1).
    """
    tau_1_eff = float(tau_1_eff)
    c1 = 1.0 - float(tau_2_eff) * float(delta)   # d1 = c1*z1 - z0*(c2 + c3*z0^2)
    c2 = float(tau_2_eff) * float(beta)
    c3 = float(tau_2_eff) * float(alpha)

    def kernel(x_ref, o_ref):
        x = x_ref[...].astype(jnp.float32)                    # (br, 128) f32 math
        lane = lax.broadcasted_iota(jnp.int32, x.shape, 1)
        is_even = (lane & 1) == 0
        partner_lane = lane ^ 1                                # lane of my pair partner

        # Two single-lane rotations on the XLU (free slot for a mem-bound kernel).
        r1 = pltpu.roll(x, 1, axis=1)
        r127 = pltpu.roll(x, LANES - 1, axis=1)
        # Which source lane does r127 carry at each lane?  (direction-agnostic)
        src127 = pltpu.roll(lane, LANES - 1, axis=1)
        partner = jnp.where(src127 == partner_lane, r127, r1)  # x[:, j ^ 1]

        # Even lanes: x = z0, partner = z1.  Odd lanes: x = z1, partner = z0.
        d_even = x + tau_1_eff * partner
        d_odd = c1 * x - partner * (c2 + c3 * partner * partner)
        o_ref[...] = jnp.where(is_even, d_even, d_odd).astype(o_ref.dtype)

    return kernel


def duffing_forward(z_t, *, delta, beta, alpha, tau_1=0.05, tau_2=0.05,
                    bin_sz=0.005, block_rows=4096):
    """Pallas implementation of DuffingOscillator.forward.

    z_t: [..., 2]  ->  array of the same shape/dtype.
    """
    orig_shape = z_t.shape
    assert orig_shape[-1] == 2, "state dimension must be 2"
    orig_dtype = z_t.dtype

    lead = math.prod(orig_shape[:-1])   # static; no trace-time device work
    n = 2 * lead                        # interleaved flat length

    # Tiny inputs: launch + layout overhead dwarfs the work on every TPU gen.
    if n < TINY_N:
        return duffing_forward_ref(z_t, delta=delta, beta=beta, alpha=alpha,
                                   tau_1=tau_1, tau_2=tau_2, bin_sz=bin_sz)

    # Native f32 / bf16 I/O (bf16 halves HBM traffic); other dtypes round-trip
    # through f32 (matches the previous behavior; math is f32 either way).
    if orig_dtype in (jnp.dtype(jnp.float32), jnp.dtype(jnp.bfloat16)):
        io_dtype = orig_dtype
        x = z_t
    else:
        io_dtype = jnp.dtype(jnp.float32)
        x = z_t.astype(jnp.float32)

    flat = x.reshape(n)                 # zero-copy view of the interleaved state
    pad = (-n) % LANES
    if pad:
        # TODO(synk): rare ragged tail (pair count not a multiple of 64) costs an
        # extra pad + slice HBM pass; could instead be masked in-kernel.
        flat = jnp.pad(flat, (0, pad))
    rows = (n + pad) // LANES

    # Block rows: big enough to sit on the HBM-bandwidth plateau (~1-2 MiB per
    # operand), capped at `block_rows` (v5e scoped-VMEM safe: 4096*128*4B = 2 MiB
    # per operand, 8 MiB total with double-buffered in+out), and shrunk so the
    # grid keeps at least ~MIN_GRID_STEPS steps for v7x megacore sharding.
    br = min(block_rows, pl.cdiv(rows, MIN_GRID_STEPS))
    br = max(BR_ALIGN, (br // BR_ALIGN) * BR_ALIGN)
    grid = (pl.cdiv(rows, br),)         # last block may be row-partial (masked)

    kernel = _make_duffing_kernel(delta, beta, alpha,
                                  bin_sz / tau_1, bin_sz / tau_2)

    out2d = pl.pallas_call(
        kernel,
        out_shape=jax.ShapeDtypeStruct((rows, LANES), io_dtype),
        grid_spec=pltpu.PrefetchScalarGridSpec(
            num_scalar_prefetch=0,
            grid=grid,
            in_specs=[pl.BlockSpec((br, LANES), lambda i: (i, 0))],
            out_specs=pl.BlockSpec((br, LANES), lambda i: (i, 0)),
        ),
        compiler_params=pltpu.CompilerParams(
            dimension_semantics=("parallel",),
        ),
    )(flat.reshape(rows, LANES))

    out_flat = out2d.reshape(rows * LANES)
    if pad:
        out_flat = out_flat[:n]
    out = out_flat.reshape(orig_shape)
    return out if out.dtype == orig_dtype else out.astype(orig_dtype)


if __name__ == "__main__":
    # Oscillator parameters (module __init__ args; static floats here).
    delta, beta, alpha = 0.1, -1.0, 1.0
    key = jax.random.PRNGKey(0)
    k1, k2, k3 = jax.random.split(key, 3)

    # 1) Small latent trajectory (batch=2, seq=16, state=2): tiny-input path.
    z_small = jax.random.normal(k1, (2, 16, 2), dtype=jnp.float32)
    out_small = jax.block_until_ready(
        duffing_forward(z_small, delta=delta, beta=beta, alpha=alpha))
    ref_small = duffing_forward_ref(z_small, delta=delta, beta=beta, alpha=alpha)
    assert out_small.shape == z_small.shape and out_small.dtype == z_small.dtype
    assert jnp.allclose(out_small, ref_small, atol=1e-6, rtol=1e-6)

    # 2) Medium f32 trajectory: multi-step pipelined grid, zero-copy layout.
    z_f32 = jax.random.normal(k2, (4, 8192, 2), dtype=jnp.float32)
    out_f32 = jax.block_until_ready(
        duffing_forward(z_f32, delta=delta, beta=beta, alpha=alpha))
    ref_f32 = duffing_forward_ref(z_f32, delta=delta, beta=beta, alpha=alpha)
    assert jnp.allclose(out_f32, ref_f32, atol=1e-5, rtol=1e-5)

    # 3) Native bf16 I/O path (bf16 loads/stores, f32 math in-register).
    z_bf16 = jax.random.normal(k3, (4, 4096, 2), dtype=jnp.float32).astype(jnp.bfloat16)
    out_bf16 = jax.block_until_ready(
        duffing_forward(z_bf16, delta=delta, beta=beta, alpha=alpha))
    ref_bf16 = duffing_forward_ref(z_bf16.astype(jnp.float32),
                                   delta=delta, beta=beta, alpha=alpha)
    assert out_bf16.dtype == jnp.bfloat16
    assert jnp.allclose(out_bf16.astype(jnp.float32), ref_bf16, atol=3e-2, rtol=3e-2)

    # 4) Ragged leading size (pair count not a multiple of 64): padded tail path
    #    + row-partial last grid block.
    z_ragged = jax.random.normal(k1, (3, 1000, 2), dtype=jnp.float32)
    out_ragged = jax.block_until_ready(
        duffing_forward(z_ragged, delta=delta, beta=beta, alpha=alpha))
    ref_ragged = duffing_forward_ref(z_ragged, delta=delta, beta=beta, alpha=alpha)
    assert out_ragged.shape == z_ragged.shape
    assert jnp.allclose(out_ragged, ref_ragged, atol=1e-5, rtol=1e-5)

    print("KERNEL_OK")
</pallas_src>

<mosaic_0001>
module attributes {stable_mosaic.version = 11 : i64} {
  func.func @kernel(%arg0: i32, %arg1: memref<64x128xf32, #tpu.memory_space<vmem>>, %arg2: memref<64x128xf32, #tpu.memory_space<vmem>>) attributes {dimension_semantics = [#tpu.dimension_semantics<parallel>], iteration_bounds = array<i64: 8>, scalar_prefetch = 0 : i64, scratch_operands = 0 : i64, tpu.core_type = #tpu.core_type<tc>, window_params = [{transform_indices = @transform_0, window_bounds = array<i64: 64, 128>}, {transform_indices = @transform_1, window_bounds = array<i64: 64, 128>}]} {
    %c0 = arith.constant 0 : index
    %c0_0 = arith.constant 0 : index
    %0 = vector.load %arg1[%c0, %c0_0] : memref<64x128xf32, #tpu.memory_space<vmem>>, vector<64x128xf32>
    %1 = tpu.iota {dimensions = array<i32: 1>} : vector<64x128xi32>
    %c1_i32 = arith.constant 1 : i32
    %2 = vector.broadcast %c1_i32 : i32 to vector<64x128xi32>
    %3 = arith.andi %1, %2 : vector<64x128xi32>
    %c0_i32 = arith.constant 0 : i32
    %4 = vector.broadcast %c0_i32 : i32 to vector<64x128xi32>
    %5 = arith.cmpi eq, %3, %4 : vector<64x128xi32>
    %c1_i32_1 = arith.constant 1 : i32
    %6 = vector.broadcast %c1_i32_1 : i32 to vector<64x128xi32>
    %7 = arith.xori %1, %6 : vector<64x128xi32>
    %c1_i32_2 = arith.constant 1 : i32
    %8 = tpu.dynamic_rotate %0 by %c1_i32_2 dim 1 : vector<64x128xf32>, i32 -> vector<64x128xf32>
    %c127_i32 = arith.constant 127 : i32
    %9 = tpu.dynamic_rotate %0 by %c127_i32 dim 1 : vector<64x128xf32>, i32 -> vector<64x128xf32>
    %c127_i32_3 = arith.constant 127 : i32
    %10 = tpu.dynamic_rotate %1 by %c127_i32_3 dim 1 : vector<64x128xi32>, i32 -> vector<64x128xi32>
    %11 = arith.cmpi eq, %10, %7 : vector<64x128xi32>
    %12 = arith.select %11, %9, %8 : vector<64x128xi1>, vector<64x128xf32>
    %cst = arith.constant 1.000000e-01 : f32
    %13 = vector.broadcast %cst : f32 to vector<64x128xf32>
    %14 = arith.mulf %13, %12 : vector<64x128xf32>
    %15 = arith.addf %0, %14 : vector<64x128xf32>
    %cst_4 = arith.constant 9.900000e-01 : f32
    %16 = vector.broadcast %cst_4 : f32 to vector<64x128xf32>
    %17 = arith.mulf %16, %0 : vector<64x128xf32>
    %cst_5 = arith.constant 1.000000e-01 : f32
    %18 = vector.broadcast %cst_5 : f32 to vector<64x128xf32>
    %19 = arith.mulf %18, %12 : vector<64x128xf32>
    %20 = arith.mulf %19, %12 : vector<64x128xf32>
    %cst_6 = arith.constant -1.000000e-01 : f32
    %21 = vector.broadcast %cst_6 : f32 to vector<64x128xf32>
    %22 = arith.addf %21, %20 : vector<64x128xf32>
    %23 = arith.mulf %12, %22 : vector<64x128xf32>
    %24 = arith.subf %17, %23 : vector<64x128xf32>
    %25 = arith.select %5, %15, %24 : vector<64x128xi1>, vector<64x128xf32>
    %c0_7 = arith.constant 0 : index
    %c0_8 = arith.constant 0 : index
    %26 = vector.load %arg2[%c0_7, %c0_8] : memref<64x128xf32, #tpu.memory_space<vmem>>, vector<64x128xf32>
    tpu.vector_store %arg2[%c0_7, %c0_8], %25 {strides = array<i32>} : memref<64x128xf32, #tpu.memory_space<vmem>>, vector<64x128xf32>,
    return
  }
  func.func @transform_0(%arg0: i32) -> (i32, i32) {
    %c0_i32 = arith.constant 0 : i32
    %c0_i32_0 = arith.constant 0 : i32
    return %arg0, %c0_i32 : i32, i32
  }
  func.func @transform_1(%arg0: i32) -> (i32, i32) {
    %c0_i32 = arith.constant 0 : i32
    %c0_i32_0 = arith.constant 0 : i32
    return %arg0, %c0_i32 : i32, i32
  }
}

</mosaic_0001>

<llo_original>
// kernel: tpu_custom_call.1
$region0: #{tpu_custom_call.1}
  #allocation0 [shape = 'u32[]', space=smem, size = 0x4, offset = 0x4, fixed_abs, tag = 'smem constant byte address 0x4 - core index']
  #allocation1 [shape = 'u32[72,128]{1,0:T(1,128)}', space=vmem, size = 0x9000, scoped, tag = 'internal scratch']
  %s0 = inlined_call_operand.hbm [shape: f32[512,128], index: 0, kind: input, shape index: {}]
  %s1 = inlined_call_operand.hbm [shape: f32[512,128], index: 1, kind: output, shape index: {}]
  %s2 = sld [smem:[#allocation0]]
  $region41: #{tpu_custom_call.1} parent=0
    _
  %s4 = ssub.s32 1, %s2
  %s5 = scalar_select 0, %s4, %s2
  $region1: #{tpu_custom_call.1} parent=0
    #allocation2 [shape = 'u8[65536]{0}', space=vmem, size = 0x10000, scoped, tag = 'input window, operand 0']
    #allocation3 [shape = 's32[2]{0}', space=sflag, size = 0x8, scoped, tag = 'scoped memory for tpu_custom_call.1']
    #allocation4 [shape = 's32[2]{0}', space=sflag, size = 0x8, scoped, tag = 'scoped memory for tpu_custom_call.1']
    #allocation5 [shape = 'u8[65536]{0}', space=vmem, size = 0x10000, scoped, tag = 'output window, operand 0']
    %6 = vsyncpa [#allocation3], 0
    %s7 = scalar_lea.sflag [#allocation3], 1
    %8 = vsyncpa %s7, 0
    %9 = vsyncpa [#allocation4], 0
    %s10 = scalar_lea.sflag [#allocation4], 1
    %11 = vsyncpa %s10, 0
    loop: start=0, step=1, limit=10
    $region2: #{tpu_custom_call.1} parent=1 // loop_pre_header
      _
    $region3: #{tpu_custom_call.1} parent=1 // loop_header
      %s13 = sphi 0, %s17
      %p14 = scmp.ge.s32.totalorder %s13, 10
      %s23 = sphi 0, %s25
      %s26 = sphi 0, %s23
      %s27 = sphi 0, %s26
      %s43 = sphi 0, %s27
      %s49 = sphi 0, %s51
      %s52 = sphi 0, %s49
      %s53 = sphi 0, %s52
      %s69 = sphi 0, %s53
    $region4: #{tpu_custom_call.1} parent=1 // loop_header_branch
      %16 = sbr.rel (%p14) target = $region8
    $region5: #{tpu_custom_call.1} parent=1 // loop_body
      %s18 = ssub.s32 %s13, 1
      %s19 = ssub.s32 %s13, 2
      %s20 = sadd.s32 %s13, 1
      %s21 = ssub.s32 %s13, %s20
      %p22 = scmp.eq.s32.totalorder %s21, 0
      %s24 = sadd.s32 %s23, 1
      %s25 = scalar_select %p22, %s23, %s24
      %p28 = pneg %p22
      %p29 = scmp.eq.s32.totalorder %s13, 7
      %p30 = por %p28, %p29
      %p31 = scmp.ne.s32.totalorder %s23, %s26
      %p32 = scmp.eq.s32.totalorder %s13, 0
      %p33 = por %p31, %p32
      %p34 = scmp.ne.s32.totalorder %s23, %s26
      %p35 = scmp.eq.s32.totalorder %s18, 7
      %p36 = por %p34, %p35
      %p37 = scmp.ne.s32.totalorder %s26, %s27
      %p38 = scmp.eq.s32.totalorder %s18, 0
      %p39 = por %p37, %p38
      %p40 = scmp.ne.s32.totalorder %s26, %s27
      %p41 = scmp.eq.s32.totalorder %s19, 7
      %p42 = por %p40, %p41
      %p44 = scmp.ne.s32.totalorder %s27, %s43
      %p45 = scmp.eq.s32.totalorder %s19, 0
      %p46 = por %p44, %p45
      %s47 = ssub.s32 %s13, %s20
      %p48 = scmp.eq.s32.totalorder %s47, 0
      %s50 = sadd.s32 %s49, 1
      %s51 = scalar_select %p48, %s49, %s50
      %p54 = pneg %p48
      %p55 = scmp.eq.s32.totalorder %s13, 7
      %p56 = por %p54, %p55
      %p57 = scmp.ne.s32.totalorder %s49, %s52
      %p58 = scmp.eq.s32.totalorder %s13, 0
      %p59 = por %p57, %p58
      %p60 = scmp.ne.s32.totalorder %s49, %s52
      %p61 = scmp.eq.s32.totalorder %s18, 7
      %p62 = por %p60, %p61
      %p63 = scmp.ne.s32.totalorder %s52, %s53
      %p64 = scmp.eq.s32.totalorder %s18, 0
      %p65 = por %p63, %p64
      %p66 = scmp.ne.s32.totalorder %s52, %s53
      %p67 = scmp.eq.s32.totalorder %s19, 7
      %p68 = por %p66, %p67
      %p70 = scmp.ne.s32.totalorder %s53, %s69
      %p71 = scmp.eq.s32.totalorder %s19, 0
      %p72 = por %p70, %p71
      %p73 = scmp.le.s32.totalorder 1, %s13
      %p74 = scmp.lt.s32.totalorder %s13, 9
      %p75 = pnand %p73, %p74
      %p76 = pneg %p75
      // Predicated region
      $region9: #{tpu_custom_call.1} parent=5 // pred_check
        _
      $region10: #{tpu_custom_call.1} parent=5 // pred_check_branch
        %78 = sbr.rel (%p75) target = $region12
      $region11: #{tpu_custom_call.1} parent=5 // pred_region
        %s79 = ssub.s32 %s13, 1
      $region12: #{tpu_custom_call.1} parent=5 // pred_fallthru
        _
      %p80 = scmp.lt.s32.totalorder %s13, 8
      // Predicated region
      $region13: #{tpu_custom_call.1} parent=5 // pred_check
        %p81 = pneg %p80
      $region14: #{tpu_custom_call.1} parent=5 // pred_check_branch
        %83 = sbr.rel (%p81) target = $region16
      $region15: #{tpu_custom_call.1} parent=5 // pred_region
        // Predicated region
        $region17: #{tpu_custom_call.1} parent=15 // pred_check
          %p84 = pneg %p33
        $region18: #{tpu_custom_call.1} parent=15 // pred_check_branch
          %86 = sbr.rel (%p84) target = $region20
        $region19: #{tpu_custom_call.1} parent=15 // pred_region
          %s87 = sand.u32 %s23, 1
          %s88 = scalar_lea.sflag [#allocation3], %s87
          %s89 = sand.u32 %s23, 1
          %s90 = smul.addr %s89, 64
          %s91 = scalar_lea.vmem [#allocation2], %s90
          %s92 = smul.u32 8, %s13
          %94 = vsyncadd %s88, 0
          %s95 = smul.addr %s92, 8
          %s96 = scalar_lea.hbm %s0, %s95
          %s97 = sshll.u32 %s96, 4
          %s98 = int_to_ptr.hbm [resolvable:$true] %s97
          %s99 = sshll.u32 %s91, 4
          %s100 = int_to_ptr.vmem [resolvable:$true] %s99
          %105 = dma.hbm_to_vmem [thread:$0]  %s98, 1024, %s100, %s88, 128, 128, 8
        $region20: #{tpu_custom_call.1} parent=15 // pred_fallthru
          _
      $region16: #{tpu_custom_call.1} parent=5 // pred_fallthru
        _
      %p106 = scmp.le.s32.totalorder 1, %s13
      %p107 = scmp.lt.s32.totalorder %s13, 9
      %p108 = pnand %p106, %p107
      %p109 = pneg %p108
      // Predicated region
      $region21: #{tpu_custom_call.1} parent=5 // pred_check
        _
      $region22: #{tpu_custom_call.1} parent=5 // pred_check_branch
        %111 = sbr.rel (%p108) target = $region24
      $region23: #{tpu_custom_call.1} parent=5 // pred_region
        %s112 = ssub.s32 %s13, 1
        %s113 = sand.u32 %s26, 1
        %s114 = scalar_lea.sflag [#allocation3], %s113
        %s115 = sand.u32 %s26, 1
        %s116 = smul.addr %s115, 64
        %s117 = scalar_lea.vmem [#allocation2], %s116
        // Predicated region
        $region25: #{tpu_custom_call.1} parent=23 // pred_check
          %p118 = pneg %p39
        $region26: #{tpu_custom_call.1} parent=23 // pred_check_branch
          %120 = sbr.rel (%p118) target = $region28
        $region27: #{tpu_custom_call.1} parent=23 // pred_region
          %122 = dma.done %s114, 1024
        $region28: #{tpu_custom_call.1} parent=23 // pred_fallthru
          _
        %s123 = sand.u32 %s26, 1
        %s124 = scalar_lea.sflag [#allocation3], %s123
        %s125 = sand.u32 %s26, 1
        %s126 = smul.addr %s125, 64
        %s127 = scalar_lea.vmem [#allocation2], %s126
        %p128 = pneg %p39
        %p129 = pneg %p36
        %p130 = pneg %p65
        %p131 = pneg %p62
        %s132 = sand.u32 %s52, 1
        %s133 = scalar_lea.sflag [#allocation4], %s132
        %s134 = sand.u32 %s52, 1
        %s135 = smul.addr %s134, 64
        %s136 = scalar_lea.vmem [#allocation5], %s135
        %s137 = smul.u32 8, %s18
        %s138 = smul.u32 8, %s18
        %v139 = vld [vmem:[%s117] sm:$0xff]
        %v140 = vld [vmem:[%s117 + $0x8] sm:$0xff]
        %v141 = vld [vmem:[%s117 + $0x10] sm:$0xff]
        %v142 = vld [vmem:[%s117 + $0x18] sm:$0xff]
        %v143 = vld [vmem:[%s117 + $0x20] sm:$0xff]
        %v144 = vld [vmem:[%s117 + $0x28] sm:$0xff]
        %v145 = vld [vmem:[%s117 + $0x30] sm:$0xff]
        %v146 = vld [vmem:[%s117 + $0x38] sm:$0xff]
        %v147 = vlaneseq
        %v148 = vand.u32 %v147, 127
        %v149 = vand.u32 %v148, 1
        %vm150 = vcmp.eq.s32.totalorder %v149, 0
        %v151 = vxor.u32 %v148, 1
        %152 = vrot.lane.b32.xlu0 %v139, 1
        %v153 = vpop.permute.xlu0 %152
        %154 = vrot.lane.b32.xlu0 %v140, 1
        %v155 = vpop.permute.xlu0 %154
        %156 = vrot.lane.b32.xlu0 %v141, 1
        %v157 = vpop.permute.xlu0 %156
        %158 = vrot.lane.b32.xlu0 %v142, 1
        %v159 = vpop.permute.xlu0 %158
        %160 = vrot.lane.b32.xlu0 %v143, 1
        %v161 = vpop.permute.xlu0 %160
        %162 = vrot.lane.b32.xlu0 %v144, 1
        %v163 = vpop.permute.xlu0 %162
        %164 = vrot.lane.b32.xlu0 %v145, 1
        %v165 = vpop.permute.xlu0 %164
        %166 = vrot.lane.b32.xlu0 %v146, 1
        %v167 = vpop.permute.xlu0 %166
        %168 = vrot.lane.b32.xlu0 %v139, 127
        %v169 = vpop.permute.xlu0 %168
        %170 = vrot.lane.b32.xlu0 %v140, 127
        %v171 = vpop.permute.xlu0 %170
        %172 = vrot.lane.b32.xlu0 %v141, 127
        %v173 = vpop.permute.xlu0 %172
        %174 = vrot.lane.b32.xlu0 %v142, 127
        %v175 = vpop.permute.xlu0 %174
        %176 = vrot.lane.b32.xlu0 %v143, 127
        %v177 = vpop.permute.xlu0 %176
        %178 = vrot.lane.b32.xlu0 %v144, 127
        %v179 = vpop.permute.xlu0 %178
        %180 = vrot.lane.b32.xlu0 %v145, 127
        %v181 = vpop.permute.xlu0 %180
        %182 = vrot.lane.b32.xlu0 %v146, 127
        %v183 = vpop.permute.xlu0 %182
        %184 = vrot.lane.b32.xlu0 %v148, 127
        %v185 = vpop.permute.xlu0 %184
        %vm186 = vcmp.eq.s32.totalorder %v185, %v151
        %v187 = vsel %vm186, %v169, %v153
        %v188 = vsel %vm186, %v171, %v155
        %v189 = vsel %vm186, %v173, %v157
        %v190 = vsel %vm186, %v175, %v159
        %v191 = vsel %vm186, %v177, %v161
        %v192 = vsel %vm186, %v179, %v163
        %v193 = vsel %vm186, %v181, %v165
        %v194 = vsel %vm186, %v183, %v167
        %v195 = vmul.f32 %v187, 0.1
        %v196 = vmul.f32 %v188, 0.1
        %v197 = vmul.f32 %v189, 0.1
        %v198 = vmul.f32 %v190, 0.1
        %v199 = vmul.f32 %v191, 0.1
        %v200 = vmul.f32 %v192, 0.1
        %v201 = vmul.f32 %v193, 0.1
        %v202 = vmul.f32 %v194, 0.1
        %v203 = vadd.f32 %v139, %v195
        %v204 = vadd.f32 %v140, %v196
        %v205 = vadd.f32 %v141, %v197
        %v206 = vadd.f32 %v142, %v198
        %v207 = vadd.f32 %v143, %v199
        %v208 = vadd.f32 %v144, %v200
        %v209 = vadd.f32 %v145, %v201
        %v210 = vadd.f32 %v146, %v202
        %v211 = vmul.f32 %v139, 0.99
        %v212 = vmul.f32 %v140, 0.99
        %v213 = vmul.f32 %v141, 0.99
        %v214 = vmul.f32 %v142, 0.99
        %v215 = vmul.f32 %v143, 0.99
        %v216 = vmul.f32 %v144, 0.99
        %v217 = vmul.f32 %v145, 0.99
        %v218 = vmul.f32 %v146, 0.99
        %v219 = vmul.f32 %v195, %v187
        %v220 = vmul.f32 %v196, %v188
        %v221 = vmul.f32 %v197, %v189
        %v222 = vmul.f32 %v198, %v190
        %v223 = vmul.f32 %v199, %v191
        %v224 = vmul.f32 %v200, %v192
        %v225 = vmul.f32 %v201, %v193
        %v226 = vmul.f32 %v202, %v194
        %v227 = vadd.f32 %v219, -0.1
        %v228 = vadd.f32 %v220, -0.1
        %v229 = vadd.f32 %v221, -0.1
        %v230 = vadd.f32 %v222, -0.1
        %v231 = vadd.f32 %v223, -0.1
        %v232 = vadd.f32 %v224, -0.1
        %v233 = vadd.f32 %v225, -0.1
        %v234 = vadd.f32 %v226, -0.1
        %v235 = vmul.f32 %v187, %v227
        %v236 = vmul.f32 %v188, %v228
        %v237 = vmul.f32 %v189, %v229
        %v238 = vmul.f32 %v190, %v230
        %v239 = vmul.f32 %v191, %v231
        %v240 = vmul.f32 %v192, %v232
        %v241 = vmul.f32 %v193, %v233
        %v242 = vmul.f32 %v194, %v234
        %v243 = vsub.f32 %v211, %v235
        %v244 = vsub.f32 %v212, %v236
        %v245 = vsub.f32 %v213, %v237
        %v246 = vsub.f32 %v214, %v238
        %v247 = vsub.f32 %v215, %v239
        %v248 = vsub.f32 %v216, %v240
        %v249 = vsub.f32 %v217, %v241
        %v250 = vsub.f32 %v218, %v242
        %v251 = vsel %vm150, %v203, %v243
        %v252 = vsel %vm150, %v204, %v244
        %v253 = vsel %vm150, %v205, %v245
        %v254 = vsel %vm150, %v206, %v246
        %v255 = vsel %vm150, %v207, %v247
        %v256 = vsel %vm150, %v208, %v248
        %v257 = vsel %vm150, %v209, %v249
        %v258 = vsel %vm150, %v210, %v250
        %259 = vst [vmem:[%s136] sm:$0xff] %v251
        %260 = vst [vmem:[%s136 + $0x8] sm:$0xff] %v252
        %261 = vst [vmem:[%s136 + $0x10] sm:$0xff] %v253
        %262 = vst [vmem:[%s136 + $0x18] sm:$0xff] %v254
        %263 = vst [vmem:[%s136 + $0x20] sm:$0xff] %v255
        %264 = vst [vmem:[%s136 + $0x28] sm:$0xff] %v256
        %265 = vst [vmem:[%s136 + $0x30] sm:$0xff] %v257
        %266 = vst [vmem:[%s136 + $0x38] sm:$0xff] %v258
        %s267 = sand.u32 %s52, 1
        %s268 = scalar_lea.sflag [#allocation4], %s267
        %s269 = sand.u32 %s52, 1
        %s270 = smul.addr %s269, 64
        %s271 = scalar_lea.vmem [#allocation5], %s270
        // Predicated region
        $region29: #{tpu_custom_call.1} parent=23 // pred_check
          %p272 = pneg %p62
        $region30: #{tpu_custom_call.1} parent=23 // pred_check_branch
          %274 = sbr.rel (%p272) target = $region32
        $region31: #{tpu_custom_call.1} parent=23 // pred_region
          %s275 = smul.u32 8, %s18
          %277 = vsyncadd %s268, 0
          %s278 = smul.addr %s275, 8
          %s279 = scalar_lea.hbm %s1, %s278
          %s280 = sshll.u32 %s271, 4
          %s281 = int_to_ptr.vmem [resolvable:$true] %s280
          %s282 = sshll.u32 %s279, 4
          %s283 = int_to_ptr.hbm [resolvable:$true] %s282
          %288 = dma.vmem_to_hbm [thread:$0]  %s281, 1024, %s283, %s268, 128, 128, 8
        $region32: #{tpu_custom_call.1} parent=23 // pred_fallthru
          _
      $region24: #{tpu_custom_call.1} parent=5 // pred_fallthru
        _
      %p289 = scmp.le.s32.totalorder 2, %s13
      // Predicated region
      $region33: #{tpu_custom_call.1} parent=5 // pred_check
        %p290 = pneg %p289
      $region34: #{tpu_custom_call.1} parent=5 // pred_check_branch
        %292 = sbr.rel (%p290) target = $region36
      $region35: #{tpu_custom_call.1} parent=5 // pred_region
        %s293 = ssub.s32 %s13, 2
        // Predicated region
        $region37: #{tpu_custom_call.1} parent=35 // pred_check
          %p294 = pneg %p68
        $region38: #{tpu_custom_call.1} parent=35 // pred_check_branch
          %296 = sbr.rel (%p294) target = $region40
        $region39: #{tpu_custom_call.1} parent=35 // pred_region
          %s297 = sand.u32 %s53, 1
          %s298 = scalar_lea.sflag [#allocation4], %s297
          %s299 = sand.u32 %s53, 1
          %s300 = smul.addr %s299, 64
          %s301 = scalar_lea.vmem [#allocation5], %s300
          %303 = dma.done %s298, 1024
        $region40: #{tpu_custom_call.1} parent=35 // pred_fallthru
          _
      $region36: #{tpu_custom_call.1} parent=5 // pred_fallthru
        _
    $region6: #{tpu_custom_call.1} parent=1 // loop_footer
      %s17 = sadd.s32 1, %s13
    $region7: #{tpu_custom_call.1} parent=1 // loop_footer_branch
      %12 = sbr.rel target = $region3
    $region8: #{tpu_custom_call.1} parent=1 // loop_exit
      _
    %304 = vsyncpa [#allocation3], 1
    %s305 = scalar_lea.sflag [#allocation3], 1
    %306 = vsyncpa %s305, 1
    %307 = vsyncpa [#allocation4], 1
    %s308 = scalar_lea.sflag [#allocation4], 1
    %309 = vsyncpa %s308, 1

</llo_original>
